<compile_context>
chip_gen: v5e
topology: v5e:2x2
jax: 0.10.0
libtpu: 0.0.40
codegen_flags: <defaults>
</compile_context>

<pallas_src>
import functools

import jax
import jax.numpy as jnp
from jax.experimental import pallas as pl
from jax.experimental.pallas import tpu as pltpu


def _round_up(x, m):
    return ((x + m - 1) // m) * m


# ----------------------------------------------------------------------------
# Kernel bodies
# ----------------------------------------------------------------------------
def _gn_output_kernel(h_ref, w_ref, b_ref, res_ref, g_ref, beta_ref, o_ref,
                      *, eps, inv_h, mm_dtype):
    """Weight-resident path: one row-block per grid step, full K per dot."""
    # Cast the f32 activation tile to bf16 on the VPU right before the MXU;
    # f32 accumulation on the MXU.
    x = jnp.dot(h_ref[...].astype(mm_dtype), w_ref[...],
                preferred_element_type=jnp.float32)

    # Dropout: identity at inference time.
    # TODO(synk): training-mode dropout (pltpu.prng_random_bits mask) not implemented.

    # Bias + residual ride on one VPU pass (all f32).
    y = x + b_ref[...] + res_ref[...].astype(jnp.float32)

    # Two-pass LayerNorm statistics (matches torch.nn.LayerNorm; avoids the
    # E[y^2]-E[y]^2 cancellation).  XLU reductions are filler under the MXU.
    mean = jnp.sum(y, axis=-1, keepdims=True) * inv_h
    d = y - mean
    var = jnp.sum(d * d, axis=-1, keepdims=True) * inv_h
    inv = jax.lax.rsqrt(var + eps)
    o_ref[...] = (d * inv * g_ref[...] + beta_ref[...]).astype(o_ref.dtype)


def _gn_output_ktiled_kernel(h_ref, w_ref, b_ref, res_ref, g_ref, beta_ref,
                             o_ref, acc_ref, *, eps, inv_h, mm_dtype):
    """K-tiled path for weights too wide to be VMEM-resident."""
    k = pl.program_id(1)

    @pl.when(k == 0)
    def _():
        acc_ref[...] = jnp.zeros_like(acc_ref)

    acc_ref[...] += jnp.dot(h_ref[...].astype(mm_dtype), w_ref[...],
                            preferred_element_type=jnp.float32)

    @pl.when(k == pl.num_programs(1) - 1)
    def _():
        # Dropout: identity at inference time.
        y = acc_ref[...] + b_ref[...] + res_ref[...].astype(jnp.float32)
        mean = jnp.sum(y, axis=-1, keepdims=True) * inv_h
        d = y - mean
        var = jnp.sum(d * d, axis=-1, keepdims=True) * inv_h
        inv = jax.lax.rsqrt(var + eps)
        o_ref[...] = (d * inv * g_ref[...] + beta_ref[...]).astype(o_ref.dtype)


# ----------------------------------------------------------------------------
# Wrapper
# ----------------------------------------------------------------------------
def _tpu_generation():
    """Best-effort (is_v7x, physical per-core VMEM bytes, #TensorCores/chip)."""
    kind = ""
    try:
        kind = jax.devices()[0].device_kind.lower()
    except Exception:
        pass
    is_v7 = "7" in kind                      # v2..v6 names contain no '7'
    vmem_phys = 64 * 2**20 if is_v7 else 128 * 2**20
    try:
        cap = int(getattr(pltpu.get_tpu_info(), "vmem_capacity_bytes", 0))
        if cap > 0:
            vmem_phys = cap
    except Exception:
        pass
    num_cores = 2 if is_v7 else 1
    return is_v7, vmem_phys, num_cores


def gn_output_forward(hidden_states, input_tensor, w, b, gamma, beta, *,
                      eps=1e-12, tm=None, matmul_dtype=jnp.bfloat16):
    """hidden_states: [B, S, K]; input_tensor: [B, S, H]; w: [K, H]; b/gamma/beta: [H]."""
    B, S, K = hidden_states.shape
    H = input_tensor.shape[-1]
    M = B * S

    out_dtype = hidden_states.dtype
    in_bytes = jnp.dtype(hidden_states.dtype).itemsize
    mm_bytes = jnp.dtype(matmul_dtype).itemsize
    res_bytes = jnp.dtype(input_tensor.dtype).itemsize
    out_bytes = jnp.dtype(out_dtype).itemsize

    is_v7, vmem_phys, num_cores = _tpu_generation()
    vmem_cap = int(0.70 * vmem_phys)          # working budget (buffers + temps)

    w_bytes = K * H * mm_bytes
    const_bytes = 3 * H * 4                   # bias / gamma / beta (f32)

    # Choose the weight-resident path (A) unless even one copy of the weight
    # would eat too much of the budget -> K-tiled reduction path (B).
    use_ktiled = w_bytes > 0.35 * vmem_cap
    tk = None
    if use_ktiled:
        for cand in (4096, 2048, 1024, 512, 256, 128):
            if cand < K and K % cand == 0:
                tk = cand
                break
        if tk is None:                        # no clean divisor of K
            use_ktiled = False

    # Single-buffer the constant-index operands (weight/bias/gamma/beta) when
    # double-buffering them would be a meaningful slice of VMEM.  Constant
    # index_maps mean they are fetched once either way.
    single_buf_consts = (not use_ktiled) and (2 * w_bytes > 0.20 * vmem_cap)
    w_bufs = 1 if single_buf_consts else 2

    # VMEM budget, including in-kernel temporaries (bf16 cast of the activation
    # tile + ~4 f32 [tm, H] intermediates), so large tm stays safe on v7x.
    def _budget_a(tm_):
        tiles = (2 * tm_ * K * in_bytes         # activation stream (native dtype)
                 + 2 * tm_ * H * res_bytes      # residual stream
                 + 2 * tm_ * H * out_bytes)     # output stream
        consts = w_bufs * (w_bytes + const_bytes)
        temps = tm_ * K * mm_bytes + 4 * tm_ * H * 4
        return tiles + consts + temps

    def _budget_b(tm_):
        tiles = (2 * tm_ * tk * in_bytes
                 + 2 * tk * H * mm_bytes
                 + 2 * tm_ * H * res_bytes
                 + 2 * tm_ * H * out_bytes
                 + 2 * const_bytes)
        temps = tm_ * tk * mm_bytes + 4 * tm_ * H * 4
        scratch = tm_ * H * 4                  # f32 accumulator
        return tiles + temps + scratch

    budget_fn = _budget_b if use_ktiled else _budget_a

    # Row tile: 512 on 128 MiB chips (v5e/v6e), 256 on v7x; shrink to fit.
    if tm is None:
        tm = 256 if is_v7 else 512
    tm_eff = min(_round_up(M, 8), _round_up(tm, 8))
    while tm_eff > 8 and budget_fn(tm_eff) > vmem_cap:
        tm_eff = max(8, _round_up(tm_eff // 2, 8))

    # v7x only: give the two TensorCores an even number of row blocks.
    if is_v7 and num_cores > 1 and M >= 512:
        g = pl.cdiv(M, tm_eff)
        if g == 1:
            tm_eff = _round_up(pl.cdiv(M, 2), 8)
        elif g % 2 == 1:
            tm_eff = _round_up(pl.cdiv(M, g + 1), 8)

    grid_m = pl.cdiv(M, tm_eff)

    # No jnp.pad and no wrapper-side activation cast: activations/residual go
    # in as-is; only the tiny weight / 1-D params are converted.
    h2 = hidden_states.reshape(M, K)
    r2 = input_tensor.reshape(M, H)
    w2 = w.astype(matmul_dtype)
    b2 = b.reshape(1, H).astype(jnp.float32)
    g2 = gamma.reshape(1, H).astype(jnp.float32)
    beta2 = beta.reshape(1, H).astype(jnp.float32)

    vmem_limit = int(min(vmem_phys - (4 << 20),
                         max(32 << 20, budget_fn(tm_eff) + (8 << 20))))

    cost = pl.CostEstimate(
        flops=2 * M * K * H,
        transcendentals=0,
        bytes_accessed=(M * K * in_bytes + K * H * mm_bytes
                        + M * H * res_bytes + 3 * H * 4 + M * H * out_bytes))

    if not use_ktiled:
        kernel = functools.partial(_gn_output_kernel, eps=eps, inv_h=1.0 / H,
                                   mm_dtype=matmul_dtype)

        def const_spec(shape):
            if single_buf_consts:
                return pl.BlockSpec(shape, lambda i: (0, 0),
                                    pipeline_mode=pl.Buffered(1))
            return pl.BlockSpec(shape, lambda i: (0, 0))

        out = pl.pallas_call(
            kernel,
            out_shape=jax.ShapeDtypeStruct((M, H), out_dtype),
            grid_spec=pltpu.PrefetchScalarGridSpec(
                num_scalar_prefetch=0,
                grid=(grid_m,),
                in_specs=[
                    pl.BlockSpec((tm_eff, K), lambda i: (i, 0)),   # activation rows
                    const_spec((K, H)),                            # dense weight
                    const_spec((1, H)),                            # dense bias
                    pl.BlockSpec((tm_eff, H), lambda i: (i, 0)),   # residual rows
                    const_spec((1, H)),                            # LN gamma
                    const_spec((1, H)),                            # LN beta
                ],
                out_specs=pl.BlockSpec((tm_eff, H), lambda i: (i, 0)),
            ),
            compiler_params=pltpu.CompilerParams(
                dimension_semantics=("parallel",),
                vmem_limit_bytes=vmem_limit),
            cost_estimate=cost,
        )(h2, w2, b2, r2, g2, beta2)
    else:
        kernel = functools.partial(_gn_output_ktiled_kernel, eps=eps,
                                   inv_h=1.0 / H, mm_dtype=matmul_dtype)
        grid_k = K // tk
        out = pl.pallas_call(
            kernel,
            out_shape=jax.ShapeDtypeStruct((M, H), out_dtype),
            grid_spec=pltpu.PrefetchScalarGridSpec(
                num_scalar_prefetch=0,
                grid=(grid_m, grid_k),
                in_specs=[
                    pl.BlockSpec((tm_eff, tk), lambda i, k: (i, k)),
                    pl.BlockSpec((tk, H), lambda i, k: (k, 0)),
                    pl.BlockSpec((1, H), lambda i, k: (0, 0)),
                    pl.BlockSpec((tm_eff, H), lambda i, k: (i, 0)),
                    pl.BlockSpec((1, H), lambda i, k: (0, 0)),
                    pl.BlockSpec((1, H), lambda i, k: (0, 0)),
                ],
                out_specs=pl.BlockSpec((tm_eff, H), lambda i, k: (i, 0)),
                scratch_shapes=[pltpu.VMEM((tm_eff, H), jnp.float32)],
            ),
            compiler_params=pltpu.CompilerParams(
                dimension_semantics=("parallel", "arbitrary"),
                vmem_limit_bytes=vmem_limit),
            cost_estimate=cost,
        )(h2, w2, b2, r2, g2, beta2)

    return out.reshape(B, S, H)


if __name__ == "__main__":
    # Small config consistent with the module (hidden a multiple of 128 for
    # lane-dense output stores; intermediate = 4 * hidden as in BERT).
    B, S = 2, 8
    intermediate_size = 512
    hidden_size = 128
    layer_norm_eps = 1e-12

    key = jax.random.PRNGKey(0)
    k1, k2, k3, k4 = jax.random.split(key, 4)

    # PyTorch Linear weight is [hidden, intermediate]; we store its transpose [K, H].
    w = jax.random.normal(k1, (intermediate_size, hidden_size), jnp.float32) * 0.02
    b = jax.random.normal(k2, (hidden_size,), jnp.float32) * 0.02
    gamma = jnp.ones((hidden_size,), jnp.float32)
    beta = jnp.zeros((hidden_size,), jnp.float32)

    hidden_states = jax.random.normal(k3, (B, S, intermediate_size), jnp.float32)
    input_tensor = jax.random.normal(k4, (B, S, hidden_size), jnp.float32)

    out = gn_output_forward(hidden_states, input_tensor, w, b, gamma, beta,
                            eps=layer_norm_eps)
    jax.block_until_ready(out)

    # Reference in plain JAX with the same bf16 MXU operands / f32 accumulation.
    ref = jnp.dot(hidden_states.astype(jnp.bfloat16).reshape(-1, intermediate_size),
                  w.astype(jnp.bfloat16),
                  preferred_element_type=jnp.float32).reshape(B, S, hidden_size)
    ref = ref + b + input_tensor
    mu = ref.mean(-1, keepdims=True)
    var = ((ref - mu) ** 2).mean(-1, keepdims=True)
    ref = (ref - mu) * jax.lax.rsqrt(var + layer_norm_eps) * gamma + beta
    assert jnp.allclose(out, ref, atol=2e-3, rtol=2e-3), "mismatch vs reference"

    print("KERNEL_OK")
</pallas_src>

<mosaic_0001>
module attributes {stable_mosaic.version = 11 : i64} {
  func.func @_gn_output_kernel(%arg0: i32, %arg1: memref<16x512xf32, #tpu.memory_space<vmem>>, %arg2: memref<512x128xbf16, #tpu.memory_space<vmem>>, %arg3: memref<1x128xf32, #tpu.memory_space<vmem>>, %arg4: memref<16x128xf32, #tpu.memory_space<vmem>>, %arg5: memref<1x128xf32, #tpu.memory_space<vmem>>, %arg6: memref<1x128xf32, #tpu.memory_space<vmem>>, %arg7: memref<16x128xf32, #tpu.memory_space<vmem>>) attributes {dimension_semantics = [#tpu.dimension_semantics<parallel>], iteration_bounds = array<i64: 1>, scalar_prefetch = 0 : i64, scratch_operands = 0 : i64, tpu.core_type = #tpu.core_type<tc>, window_params = [{transform_indices = @transform_0, window_bounds = array<i64: 16, 512>}, {pipeline_mode = #tpu.pipeline_mode<synchronous>, transform_indices = @transform_1, window_bounds = array<i64: 512, 128>}, {pipeline_mode = #tpu.pipeline_mode<synchronous>, transform_indices = @transform_2, window_bounds = array<i64: 1, 128>}, {transform_indices = @transform_3, window_bounds = array<i64: 16, 128>}, {pipeline_mode = #tpu.pipeline_mode<synchronous>, transform_indices = @transform_4, window_bounds = array<i64: 1, 128>}, {pipeline_mode = #tpu.pipeline_mode<synchronous>, transform_indices = @transform_5, window_bounds = array<i64: 1, 128>}, {transform_indices = @transform_6, window_bounds = array<i64: 16, 128>}]} {
    %c0 = arith.constant 0 : index
    %c0_0 = arith.constant 0 : index
    %0 = vector.load %arg1[%c0, %c0_0] : memref<16x512xf32, #tpu.memory_space<vmem>>, vector<16x512xf32>
    %1 = arith.truncf %0 : vector<16x512xf32> to vector<16x512xbf16>
    %c0_1 = arith.constant 0 : index
    %c0_2 = arith.constant 0 : index
    %2 = vector.load %arg2[%c0_1, %c0_2] : memref<512x128xbf16, #tpu.memory_space<vmem>>, vector<512x128xbf16>
    %cst = arith.constant dense<0.000000e+00> : vector<16x128xf32>
    %3 = tpu.matmul %1, %2, %cst {dimension_numbers = #tpu.dot_dimension_numbers<[1], [0], [0], [1], [0, 0, 1, 1], [], []>} : vector<16x512xbf16>, vector<512x128xbf16>, vector<16x128xf32> -> vector<16x128xf32>
    %c0_3 = arith.constant 0 : index
    %c0_4 = arith.constant 0 : index
    %4 = vector.load %arg3[%c0_3, %c0_4] : memref<1x128xf32, #tpu.memory_space<vmem>>, vector<1x128xf32>
    %5 = vector.broadcast %4 : vector<1x128xf32> to vector<16x128xf32>
    %6 = arith.addf %3, %5 : vector<16x128xf32>
    %c0_5 = arith.constant 0 : index
    %c0_6 = arith.constant 0 : index
    %7 = vector.load %arg4[%c0_5, %c0_6] : memref<16x128xf32, #tpu.memory_space<vmem>>, vector<16x128xf32>
    %8 = arith.addf %6, %7 : vector<16x128xf32>
    %cst_7 = arith.constant dense<0.000000e+00> : vector<16xf32>
    %9 = vector.multi_reduction <add>, %8, %cst_7 [1] : vector<16x128xf32> to vector<16xf32>
    %10 = vector.shape_cast %9 : vector<16xf32> to vector<16x1xf32>
    %cst_8 = arith.constant 7.812500e-03 : f32
    %11 = vector.broadcast %cst_8 : f32 to vector<16x1xf32>
    %12 = arith.mulf %10, %11 : vector<16x1xf32>
    %13 = vector.broadcast %12 : vector<16x1xf32> to vector<16x128xf32>
    %14 = arith.subf %8, %13 : vector<16x128xf32>
    %15 = arith.mulf %14, %14 : vector<16x128xf32>
    %cst_9 = arith.constant dense<0.000000e+00> : vector<16xf32>
    %16 = vector.multi_reduction <add>, %15, %cst_9 [1] : vector<16x128xf32> to vector<16xf32>
    %17 = vector.shape_cast %16 : vector<16xf32> to vector<16x1xf32>
    %cst_10 = arith.constant 7.812500e-03 : f32
    %18 = vector.broadcast %cst_10 : f32 to vector<16x1xf32>
    %19 = arith.mulf %17, %18 : vector<16x1xf32>
    %cst_11 = arith.constant 9.99999996E-13 : f32
    %20 = vector.broadcast %cst_11 : f32 to vector<16x1xf32>
    %21 = arith.addf %19, %20 : vector<16x1xf32>
    %22 = math.rsqrt %21 : vector<16x1xf32>
    %23 = vector.broadcast %22 : vector<16x1xf32> to vector<16x128xf32>
    %24 = arith.mulf %14, %23 : vector<16x128xf32>
    %c0_12 = arith.constant 0 : index
    %c0_13 = arith.constant 0 : index
    %25 = vector.load %arg5[%c0_12, %c0_13] : memref<1x128xf32, #tpu.memory_space<vmem>>, vector<1x128xf32>
    %26 = vector.broadcast %25 : vector<1x128xf32> to vector<16x128xf32>
    %27 = arith.mulf %24, %26 : vector<16x128xf32>
    %c0_14 = arith.constant 0 : index
    %c0_15 = arith.constant 0 : index
    %28 = vector.load %arg6[%c0_14, %c0_15] : memref<1x128xf32, #tpu.memory_space<vmem>>, vector<1x128xf32>
    %29 = vector.broadcast %28 : vector<1x128xf32> to vector<16x128xf32>
    %30 = arith.addf %27, %29 : vector<16x128xf32>
    %c0_16 = arith.constant 0 : index
    %c0_17 = arith.constant 0 : index
    %31 = vector.load %arg7[%c0_16, %c0_17] : memref<16x128xf32, #tpu.memory_space<vmem>>, vector<16x128xf32>
    tpu.vector_store %arg7[%c0_16, %c0_17], %30 {strides = array<i32>} : memref<16x128xf32, #tpu.memory_space<vmem>>, vector<16x128xf32>,
    return
  }
  func.func @transform_0(%arg0: i32) -> (i32, i32) {
    %c0_i32 = arith.constant 0 : i32
    %c0_i32_0 = arith.constant 0 : i32
    return %arg0, %c0_i32 : i32, i32
  }
  func.func @transform_1(%arg0: i32) -> (i32, i32) {
    %c0_i32 = arith.constant 0 : i32
    %c0_i32_0 = arith.constant 0 : i32
    %c0_i32_1 = arith.constant 0 : i32
    return %c0_i32, %c0_i32_0 : i32, i32
  }
  func.func @transform_2(%arg0: i32) -> (i32, i32) {
    %c0_i32 = arith.constant 0 : i32
    %c0_i32_0 = arith.constant 0 : i32
    %c0_i32_1 = arith.constant 0 : i32
    return %c0_i32, %c0_i32_0 : i32, i32
  }
  func.func @transform_3(%arg0: i32) -> (i32, i32) {
    %c0_i32 = arith.constant 0 : i32
    %c0_i32_0 = arith.constant 0 : i32
    return %arg0, %c0_i32 : i32, i32
  }
  func.func @transform_4(%arg0: i32) -> (i32, i32) {
    %c0_i32 = arith.constant 0 : i32
    %c0_i32_0 = arith.constant 0 : i32
    %c0_i32_1 = arith.constant 0 : i32
    return %c0_i32, %c0_i32_0 : i32, i32
  }
  func.func @transform_5(%arg0: i32) -> (i32, i32) {
    %c0_i32 = arith.constant 0 : i32
    %c0_i32_0 = arith.constant 0 : i32
    %c0_i32_1 = arith.constant 0 : i32
    return %c0_i32, %c0_i32_0 : i32, i32
  }
  func.func @transform_6(%arg0: i32) -> (i32, i32) {
    %c0_i32 = arith.constant 0 : i32
    %c0_i32_0 = arith.constant 0 : i32
    return %arg0, %c0_i32 : i32, i32
  }
}

</mosaic_0001>

<llo_original>
// kernel: tpu_custom_call.1
$region0: #{tpu_custom_call.1}
  #allocation0 [shape = 'u32[]', space=smem, size = 0x4, offset = 0x4, fixed_abs, tag = 'smem constant byte address 0x4 - core index']
  #allocation1 [shape = 'u32[72,128]{1,0:T(1,128)}', space=vmem, size = 0x9000, scoped, tag = 'internal scratch']
  %s0 = inlined_call_operand.hbm [shape: f32[16,512], index: 0, kind: input, shape index: {}]
  %s1 = inlined_call_operand.hbm [shape: bf16[512,128], index: 1, kind: input, shape index: {}]
  %s2 = inlined_call_operand.vmem [shape: f32[1,128], index: 2, kind: input, shape index: {}]
  %s3 = inlined_call_operand.hbm [shape: f32[16,128], index: 3, kind: input, shape index: {}]
  %s4 = inlined_call_operand.vmem [shape: f32[1,128], index: 4, kind: input, shape index: {}]
  %s5 = inlined_call_operand.vmem [shape: f32[1,128], index: 5, kind: input, shape index: {}]
  %s6 = inlined_call_operand.hbm [shape: f32[16,128], index: 6, kind: output, shape index: {}]
  %s7 = sld [smem:[#allocation0]]
  $region46: #{tpu_custom_call.1} parent=0
    _
  %s9 = ssub.s32 1, %s7
  %s10 = scalar_select 0, %s9, %s7
  $region1: #{tpu_custom_call.1} parent=0
    #allocation2 [shape = 'u8[32768]{0}', space=vmem, size = 0x8000, scoped, tag = 'input window, operand 0, single buffered']
    #allocation3 [shape = 's32[1]{0}', space=sflag, size = 0x4, scoped, tag = 'scoped memory for tpu_custom_call.1']
    #allocation4 [shape = 's32[1]{0}', space=sflag, size = 0x4, scoped, tag = 'scoped memory for tpu_custom_call.1']
    #allocation5 [shape = 'u8[131072]{0}', space=vmem, size = 0x20000, scoped, tag = 'input window, operand 1, single buffered']
    #allocation6 [shape = 's32[1]{0}', space=sflag, size = 0x4, scoped, tag = 'scoped memory for tpu_custom_call.1']
    #allocation7 [shape = 'u8[8192]{0}', space=vmem, size = 0x2000, scoped, tag = 'input window, operand 3, single buffered']
    #allocation8 [shape = 'u8[8192]{0}', space=vmem, size = 0x2000, scoped, tag = 'output window, operand 0, single buffered']
    %11 = vsyncpa [#allocation3], 0
    %12 = vsyncpa [#allocation6], 0
    %13 = vsyncpa [#allocation4], 0
    // Predicated region
    $region2: #{tpu_custom_call.1} parent=1 // pred_check
      _
    $region3: #{tpu_custom_call.1} parent=1 // pred_check_branch
      %15 = sbr.rel (0) target = $region5
    $region4: #{tpu_custom_call.1} parent=1 // pred_region
      %17 = vsyncadd [#allocation3], 0
      %s18 = sshll.u32 %s0, 4
      %s19 = int_to_ptr.hbm [resolvable:$true] %s18
      %s20 = sshll.u32 [#allocation2], 4
      %s21 = int_to_ptr.vmem [resolvable:$true] %s20
      %26 = dma.hbm_to_vmem [thread:$0]  %s19, 1024, %s21, [#allocation3], 512, 512, 32
    $region5: #{tpu_custom_call.1} parent=1 // pred_fallthru
      _
    // Predicated region
    $region6: #{tpu_custom_call.1} parent=1 // pred_check
      _
    $region7: #{tpu_custom_call.1} parent=1 // pred_check_branch
      %28 = sbr.rel (0) target = $region9
    $region8: #{tpu_custom_call.1} parent=1 // pred_region
      %30 = vsyncadd [#allocation6], 0
      %s31 = sshll.u32 %s1, 4
      %s32 = int_to_ptr.hbm [resolvable:$true] %s31
      %s33 = sshll.u32 [#allocation5], 4
      %s34 = int_to_ptr.vmem [resolvable:$true] %s33
      %39 = dma.hbm_to_vmem [thread:$0]  %s32, 4096, %s34, [#allocation6], 64, 64, 4
    $region9: #{tpu_custom_call.1} parent=1 // pred_fallthru
      _
    // Predicated region
    $region10: #{tpu_custom_call.1} parent=1 // pred_check
      _
    $region11: #{tpu_custom_call.1} parent=1 // pred_check_branch
      %41 = sbr.rel (0) target = $region13
    $region12: #{tpu_custom_call.1} parent=1 // pred_region
      _
    $region13: #{tpu_custom_call.1} parent=1 // pred_fallthru
      _
    // Predicated region
    $region14: #{tpu_custom_call.1} parent=1 // pred_check
      _
    $region15: #{tpu_custom_call.1} parent=1 // pred_check_branch
      %43 = sbr.rel (0) target = $region17
    $region16: #{tpu_custom_call.1} parent=1 // pred_region
      %45 = vsyncadd [#allocation6], 0
      %s46 = sshll.u32 %s3, 4
      %s47 = int_to_ptr.hbm [resolvable:$true] %s46
      %s48 = sshll.u32 [#allocation7], 4
      %s49 = int_to_ptr.vmem [resolvable:$true] %s48
      %54 = dma.hbm_to_vmem [thread:$0]  %s47, 256, %s49, [#allocation6], 128, 128, 8
    $region17: #{tpu_custom_call.1} parent=1 // pred_fallthru
      _
    // Predicated region
    $region18: #{tpu_custom_call.1} parent=1 // pred_check
      _
    $region19: #{tpu_custom_call.1} parent=1 // pred_check_branch
      %56 = sbr.rel (0) target = $region21
    $region20: #{tpu_custom_call.1} parent=1 // pred_region
      _
    $region21: #{tpu_custom_call.1} parent=1 // pred_fallthru
      _
    // Predicated region
    $region22: #{tpu_custom_call.1} parent=1 // pred_check
      _
    $region23: #{tpu_custom_call.1} parent=1 // pred_check_branch
      %58 = sbr.rel (0) target = $region25
    $region24: #{tpu_custom_call.1} parent=1 // pred_region
      _
    $region25: #{tpu_custom_call.1} parent=1 // pred_fallthru
      _
    // Predicated region
    $region26: #{tpu_custom_call.1} parent=1 // pred_check
      _
    $region27: #{tpu_custom_call.1} parent=1 // pred_check_branch
      %60 = sbr.rel (0) target = $region29
    $region28: #{tpu_custom_call.1} parent=1 // pred_region
      %62 = dma.done [#allocation3], 1024
    $region29: #{tpu_custom_call.1} parent=1 // pred_fallthru
      _
    // Predicated region
    $region30: #{tpu_custom_call.1} parent=1 // pred_check
      _
    $region31: #{tpu_custom_call.1} parent=1 // pred_check_branch
      %64 = sbr.rel (0) target = $region33
    $region32: #{tpu_custom_call.1} parent=1 // pred_region
      %66 = dma.done [#allocation6], 4096
    $region33: #{tpu_custom_call.1} parent=1 // pred_fallthru
      _
    // Predicated region
    $region34: #{tpu_custom_call.1} parent=1 // pred_check
      _
    $region35: #{tpu_custom_call.1} parent=1 // pred_check_branch
      %68 = sbr.rel (0) target = $region37
    $region36: #{tpu_custom_call.1} parent=1 // pred_region
      %70 = dma.done [#allocation6], 256
    $region37: #{tpu_custom_call.1} parent=1 // pred_fallthru
      _
    %v71 = vld [vmem:[#allocation2] sm:$0xff]
    %v72 = vld [vmem:[#allocation2 + $0x8] sm:$0xff]
    %v73 = vld [vmem:[#allocation2 + $0x10] sm:$0xff]
    %v74 = vld [vmem:[#allocation2 + $0x18] sm:$0xff]
    %v75 = vld [vmem:[#allocation2 + $0x20] sm:$0xff]
    %v76 = vld [vmem:[#allocation2 + $0x28] sm:$0xff]
    %v77 = vld [vmem:[#allocation2 + $0x30] sm:$0xff]
    %v78 = vld [vmem:[#allocation2 + $0x38] sm:$0xff]
    %v79 = vpack.c.bf16 %v75, %v71
    %v80 = vpack.c.bf16 %v76, %v72
    %v81 = vpack.c.bf16 %v77, %v73
    %v82 = vpack.c.bf16 %v78, %v74
    %v83 = vld [vmem:[#allocation5] sm:$0xf]
    %v84 = vld [vmem:[#allocation5 + $0x4] sm:$0xf]
    %v85 = vld [vmem:[#allocation5 + $0x8] sm:$0xf]
    %v86 = vld [vmem:[#allocation5 + $0xc] sm:$0xf]
    %v87 = vld [vmem:[#allocation5 + $0x10] sm:$0xf]
    %v88 = vld [vmem:[#allocation5 + $0x14] sm:$0xf]
    %v89 = vld [vmem:[#allocation5 + $0x18] sm:$0xf]
    %v90 = vld [vmem:[#allocation5 + $0x1c] sm:$0xf]
    %v91 = vld [vmem:[#allocation5 + $0x20] sm:$0xf]
    %v92 = vld [vmem:[#allocation5 + $0x24] sm:$0xf]
    %v93 = vld [vmem:[#allocation5 + $0x28] sm:$0xf]
    %v94 = vld [vmem:[#allocation5 + $0x2c] sm:$0xf]
    %v95 = vld [vmem:[#allocation5 + $0x30] sm:$0xf]
    %v96 = vld [vmem:[#allocation5 + $0x34] sm:$0xf]
    %v97 = vld [vmem:[#allocation5 + $0x38] sm:$0xf]
    %v98 = vld [vmem:[#allocation5 + $0x3c] sm:$0xf]
    %v99 = vld [vmem:[#allocation5 + $0x40] sm:$0xf]
    %v100 = vld [vmem:[#allocation5 + $0x44] sm:$0xf]
    %v101 = vld [vmem:[#allocation5 + $0x48] sm:$0xf]
    %v102 = vld [vmem:[#allocation5 + $0x4c] sm:$0xf]
    %v103 = vld [vmem:[#allocation5 + $0x50] sm:$0xf]
    %v104 = vld [vmem:[#allocation5 + $0x54] sm:$0xf]
    %v105 = vld [vmem:[#allocation5 + $0x58] sm:$0xf]
    %v106 = vld [vmem:[#allocation5 + $0x5c] sm:$0xf]
    %v107 = vld [vmem:[#allocation5 + $0x60] sm:$0xf]
    %v108 = vld [vmem:[#allocation5 + $0x64] sm:$0xf]
    %v109 = vld [vmem:[#allocation5 + $0x68] sm:$0xf]
    %v110 = vld [vmem:[#allocation5 + $0x6c] sm:$0xf]
    %v111 = vld [vmem:[#allocation5 + $0x70] sm:$0xf]
    %v112 = vld [vmem:[#allocation5 + $0x74] sm:$0xf]
    %v113 = vld [vmem:[#allocation5 + $0x78] sm:$0xf]
    %v114 = vld [vmem:[#allocation5 + $0x7c] sm:$0xf]
    %v115 = vld [vmem:[#allocation5 + $0x80] sm:$0xf]
    %v116 = vld [vmem:[#allocation5 + $0x84] sm:$0xf]
    %v117 = vld [vmem:[#allocation5 + $0x88] sm:$0xf]
    %v118 = vld [vmem:[#allocation5 + $0x8c] sm:$0xf]
    %v119 = vld [vmem:[#allocation5 + $0x90] sm:$0xf]
    %v120 = vld [vmem:[#allocation5 + $0x94] sm:$0xf]
    %v121 = vld [vmem:[#allocation5 + $0x98] sm:$0xf]
    %v122 = vld [vmem:[#allocation5 + $0x9c] sm:$0xf]
    %v123 = vld [vmem:[#allocation5 + $0xa0] sm:$0xf]
    %v124 = vld [vmem:[#allocation5 + $0xa4] sm:$0xf]
    %v125 = vld [vmem:[#allocation5 + $0xa8] sm:$0xf]
    %v126 = vld [vmem:[#allocation5 + $0xac] sm:$0xf]
    %v127 = vld [vmem:[#allocation5 + $0xb0] sm:$0xf]
    %v128 = vld [vmem:[#allocation5 + $0xb4] sm:$0xf]
    %v129 = vld [vmem:[#allocation5 + $0xb8] sm:$0xf]
    %v130 = vld [vmem:[#allocation5 + $0xbc] sm:$0xf]
    %v131 = vld [vmem:[#allocation5 + $0xc0] sm:$0xf]
    %v132 = vld [vmem:[#allocation5 + $0xc4] sm:$0xf]
    %v133 = vld [vmem:[#allocation5 + $0xc8] sm:$0xf]
    %v134 = vld [vmem:[#allocation5 + $0xcc] sm:$0xf]
    %v135 = vld [vmem:[#allocation5 + $0xd0] sm:$0xf]
    %v136 = vld [vmem:[#allocation5 + $0xd4] sm:$0xf]
    %v137 = vld [vmem:[#allocation5 + $0xd8] sm:$0xf]
    %v138 = vld [vmem:[#allocation5 + $0xdc] sm:$0xf]
    %v139 = vld [vmem:[#allocation5 + $0xe0] sm:$0xf]
    %v140 = vld [vmem:[#allocation5 + $0xe4] sm:$0xf]
    %v141 = vld [vmem:[#allocation5 + $0xe8] sm:$0xf]
    %v142 = vld [vmem:[#allocation5 + $0xec] sm:$0xf]
    %v143 = vld [vmem:[#allocation5 + $0xf0] sm:$0xf]
    %v144 = vld [vmem:[#allocation5 + $0xf4] sm:$0xf]
    %v145 = vld [vmem:[#allocation5 + $0xf8] sm:$0xf]
    %v146 = vld [vmem:[#allocation5 + $0xfc] sm:$0xf]
    %v147 = vld [vmem:[%s2] sm:$0x1]
    %v149 = vperm.slane %v147, 0
    %v215 = vunpack.c.l.b16 %v83
    %v216 = vunpack.c.l.b16 %v84
    %v217 = vunpack.c.l.b16 %v85
    %v218 = vunpack.c.l.b16 %v86
    %v219 = vunpack.c.l.b16 %v87
    %v220 = vunpack.c.l.b16 %v88
    %v221 = vunpack.c.l.b16 %v89
    %v222 = vunpack.c.l.b16 %v90
    %v223 = vunpack.c.l.b16 %v91
    %v224 = vunpack.c.l.b16 %v92
    %v225 = vunpack.c.l.b16 %v93
    %v226 = vunpack.c.l.b16 %v94
    %v227 = vunpack.c.l.b16 %v95
    %v228 = vunpack.c.l.b16 %v96
    %v229 = vunpack.c.l.b16 %v97
    %v230 = vunpack.c.l.b16 %v98
    %v231 = vunpack.c.l.b16 %v99
    %v232 = vunpack.c.l.b16 %v100
    %v233 = vunpack.c.l.b16 %v101
    %v234 = vunpack.c.l.b16 %v102
    %v235 = vunpack.c.l.b16 %v103
    %v236 = vunpack.c.l.b16 %v104
    %v237 = vunpack.c.l.b16 %v105
    %v238 = vunpack.c.l.b16 %v106
    %v239 = vunpack.c.l.b16 %v107
    %v240 = vunpack.c.l.b16 %v108
    %v241 = vunpack.c.l.b16 %v109
    %v242 = vunpack.c.l.b16 %v110
    %v243 = vunpack.c.l.b16 %v111
    %v244 = vunpack.c.l.b16 %v112
    %v245 = vunpack.c.l.b16 %v113
    %v246 = vunpack.c.l.b16 %v114
    %v247 = vunpack.c.l.b16 %v115
    %v248 = vunpack.c.l.b16 %v116
    %v249 = vunpack.c.l.b16 %v117
    %v250 = vunpack.c.l.b16 %v118
    %v251 = vunpack.c.l.b16 %v119
    %v252 = vunpack.c.l.b16 %v120
    %v253 = vunpack.c.l.b16 %v121
    %v254 = vunpack.c.l.b16 %v122
    %v255 = vunpack.c.l.b16 %v123
    %v256 = vunpack.c.l.b16 %v124
    %v257 = vunpack.c.l.b16 %v125
    %v258 = vunpack.c.l.b16 %v126
    %v259 = vunpack.c.l.b16 %v127
    %v260 = vunpack.c.l.b16 %v128
    %v261 = vunpack.c.l.b16 %v129
    %v262 = vunpack.c.l.b16 %v130
    %v263 = vunpack.c.l.b16 %v131
    %v264 = vunpack.c.l.b16 %v132
    %v265 = vunpack.c.l.b16 %v133
    %v266 = vunpack.c.l.b16 %v134
    %v267 = vunpack.c.l.b16 %v135
    %v268 = vunpack.c.l.b16 %v136
    %v269 = vunpack.c.l.b16 %v137
    %v270 = vunpack.c.l.b16 %v138
    %v271 = vunpack.c.l.b16 %v139
    %v272 = vunpack.c.l.b16 %v140
    %v273 = vunpack.c.l.b16 %v141
    %v274 = vunpack.c.l.b16 %v142
    %v275 = vunpack.c.l.b16 %v143
    %v276 = vunpack.c.l.b16 %v144
    %v277 = vunpack.c.l.b16 %v145
    %v278 = vunpack.c.l.b16 %v146
    %v279 = vpack.c.b16 %v216, %v215
    %v280 = vpack.c.b16 %v218, %v217
    %v281 = vpack.c.b16 %v220, %v219
    %v282 = vpack.c.b16 %v222, %v221
    %v283 = vpack.c.b16 %v224, %v223
    %v284 = vpack.c.b16 %v226, %v225
    %v285 = vpack.c.b16 %v228, %v227
    %v286 = vpack.c.b16 %v230, %v229
    %v287 = vpack.c.b16 %v232, %v231
    %v288 = vpack.c.b16 %v234, %v233
    %v289 = vpack.c.b16 %v236, %v235
    %v290 = vpack.c.b16 %v238, %v237
    %v291 = vpack.c.b16 %v240, %v239
    %v292 = vpack.c.b16 %v242, %v241
    %v293 = vpack.c.b16 %v244, %v243
    %v294 = vpack.c.b16 %v246, %v245
    %v295 = vpack.c.b16 %v248, %v247
    %v296 = vpack.c.b16 %v250, %v249
    %v297 = vpack.c.b16 %v252, %v251
    %v298 = vpack.c.b16 %v254, %v253
    %v299 = vpack.c.b16 %v256, %v255
    %v300 = vpack.c.b16 %v258, %v257
    %v301 = vpack.c.b16 %v260, %v259
    %v302 = vpack.c.b16 %v262, %v261
    %v303 = vpack.c.b16 %v264, %v263
    %v304 = vpack.c.b16 %v266, %v265
    %v305 = vpack.c.b16 %v268, %v267
    %v306 = vpack.c.b16 %v270, %v269
    %v307 = vpack.c.b16 %v272, %v271
    %v308 = vpack.c.b16 %v274, %v273
    %v309 = vpack.c.b16 %v276, %v275
    %v310 = vpack.c.b16 %v278, %v277
    %343 = vmatpush.bf16.msra.mxu0 %v286
    %344 = vmatpush.bf16.msra.mxu0 %v285
    %345 = vmatpush.bf16.msra.mxu0 %v284
    %346 = vmatpush.bf16.msra.mxu0 %v283
    %347 = vmatpush.bf16.msra.mxu0 %v282
    %348 = vmatpush.bf16.msra.mxu0 %v281
    %349 = vmatpush.bf16.msra.mxu0 %v280
    %350 = vmatpush.bf16.msra.mxu0 %v279
    %351 = vmatmul.bf16.gmra.mxu0 %v79
    %v352 = vpop.f32.mrf.mxu0
    %v353 = vadd.f32 %v149, %v352
    %v354 = vpop.f32.mrf.mxu0
    %v355 = vadd.f32 %v149, %v354
    %356 = vdwg.mxu0
    %357 = vmatpush.bf16.msra.mxu0 %v294
    %358 = vmatpush.bf16.msra.mxu0 %v293
    %359 = vmatpush.bf16.msra.mxu0 %v292
    %360 = vmatpush.bf16.msra.mxu0 %v291
    %361 = vmatpush.bf16.msra.mxu0 %v290
    %362 = vmatpush.bf16.msra.mxu0 %v289
    %363 = vmatpush.bf16.msra.mxu0 %v288
    %364 = vmatpush.bf16.msra.mxu0 %v287
    %365 = vmatmul.bf16.gmra.mxu0 %v80
    %v366 = vpop.f32.mrf.mxu0
    %v367 = vadd.f32 %v353, %v366
    %v368 = vpop.f32.mrf.mxu0
    %v369 = vadd.f32 %v355, %v368
    %370 = vdwg.mxu0
    %371 = vmatpush.bf16.msra.mxu0 %v302
    %372 = vmatpush.bf16.msra.mxu0 %v301
    %373 = vmatpush.bf16.msra.mxu0 %v300
    %374 = vmatpush.bf16.msra.mxu0 %v299
    %375 = vmatpush.bf16.msra.mxu0 %v298
    %376 = vmatpush.bf16.msra.mxu0 %v297
    %377 = vmatpush.bf16.msra.mxu0 %v296
    %378 = vmatpush.bf16.msra.mxu0 %v295
    %379 = vmatmul.bf16.gmra.mxu0 %v81
    %v380 = vpop.f32.mrf.mxu0
    %v381 = vadd.f32 %v367, %v380
    %v382 = vpop.f32.mrf.mxu0
    %v383 = vadd.f32 %v369, %v382
    %384 = vdwg.mxu0
    %385 = vmatpush.bf16.msra.mxu0 %v310
    %386 = vmatpush.bf16.msra.mxu0 %v309
    %387 = vmatpush.bf16.msra.mxu0 %v308
    %388 = vmatpush.bf16.msra.mxu0 %v307
    %389 = vmatpush.bf16.msra.mxu0 %v306
    %390 = vmatpush.bf16.msra.mxu0 %v305
    %391 = vmatpush.bf16.msra.mxu0 %v304
    %392 = vmatpush.bf16.msra.mxu0 %v303
    %393 = vmatmul.bf16.gmra.mxu0 %v82
    %v394 = vpop.f32.mrf.mxu0
    %v395 = vadd.f32 %v381, %v394
    %v396 = vpop.f32.mrf.mxu0
    %v397 = vadd.f32 %v383, %v396
    %398 = vdwg.mxu0
    %v399 = vld [vmem:[#allocation7] sm:$0xff]
    %v400 = vld [vmem:[#allocation7 + $0x8] sm:$0xff]
    %v401 = vadd.f32 %v395, %v399
    %v402 = vadd.f32 %v397, %v400
    %403 = vadd.xlane.f32.xlu0 %v401
    %v404 = vpop.xlane.xlu0 %403
    %405 = vadd.xlane.f32.xlu0 %v402
    %v406 = vpop.xlane.xlu0 %405
    %v407 = vmul.f32 %v404, 0.0078125
    %v408 = vmul.f32 %v406, 0.0078125
    %v409 = vsub.f32 %v401, %v407
    %v410 = vsub.f32 %v402, %v408
    %v411 = vmul.f32 %v409, %v409
    %v412 = vmul.f32 %v410, %v410
    %413 = vadd.xlane.f32.xlu0 %v411
    %v414 = vpop.xlane.xlu0 %413
    %415 = vadd.xlane.f32.xlu0 %v412
    %v416 = vpop.xlane.xlu0 %415
    %v417 = vmul.f32 %v414, 0.0078125
    %v418 = vmul.f32 %v416, 0.0078125
    %v419 = vadd.f32 %v417, 1e-12
    %v420 = vadd.f32 %v418, 1e-12
    %v421 = vrsqrt.pop %v419
    %v422 = vmul.f32 %v421, %v419
    %v423 = vmul.f32 %v422, %v421
    %v424 = vmul.f32 0.5, %v423
    %v425 = vsub.f32 1.5, %v424
    %v426 = vmul.f32 %v421, %v425
    %vm427 = vweird.f32 %v419
    %vm428 = vweird.f32 %v421
    %vm429 = vmor %vm427, %vm428
    %v430 = vsel %vm429, %v421, %v426
    %v431 = vrsqrt.pop %v420
    %v432 = vmul.f32 %v431, %v420
    %v433 = vmul.f32 %v432, %v431
    %v434 = vmul.f32 0.5, %v433
    %v435 = vsub.f32 1.5, %v434
    %v436 = vmul.f32 %v431, %v435
    %vm437 = vweird.f32 %v420
    %vm438 = vweird.f32 %v431
    %vm439 = vmor %vm437, %vm438
    %v440 = vsel %vm439, %v431, %v436
    %v441 = vmul.f32 %v409, %v430
    %v442 = vmul.f32 %v410, %v440
    %v443 = vld [vmem:[%s4] sm:$0x1]
    %v445 = vperm.slane %v443, 0
    %v447 = vmul.f32 %v441, %v445
    %v448 = vmul.f32 %v442, %v445
    %v449 = vld [vmem:[%s5] sm:$0x1]
    %v451 = vperm.slane %v449, 0
    %v453 = vadd.f32 %v447, %v451
    %v454 = vadd.f32 %v448, %v451
    %455 = vst [vmem:[#allocation8] sm:$0xff] %v453
    %456 = vst [vmem:[#allocation8 + $0x8] sm:$0xff] %v454
    // Predicated region
    $region38: #{tpu_custom_call.1} parent=1 // pred_check
      _
    $region39: #{tpu_custom_call.1} parent=1 // pred_check_branch
      %458 = sbr.rel (0) target = $region41
    $region40: #{tpu_custom_call.1} parent=1 // pred_region
      %460 = vsyncadd [#allocation4], 0
      %s461 = sshll.u32 [#allocation8], 4
      %s462 = int_to_ptr.vmem [resolvable:$true] %s461
      %s463 = sshll.u32 %s6, 4
      %s464 = int_to_ptr.hbm [resolvable:$true] %s463
      %469 = dma.vmem_to_hbm [thread:$0]  %s462, 256, %s464, [#allocation4], 128, 128, 8
    $region41: #{tpu_custom_call.1} parent=1 // pred_fallthru
      _
    // Predicated region
    $region42: #{tpu_custom_call.1} parent=1 // pred_check
      _
    $region43: #{tpu_custom_call.1} parent=1 // pred_check_branch
      %471 = sbr.rel (0) target = $region45
    $region44: #{tpu_custom_call.1} parent=1 // pred_region
      %473 = dma.done [#allocation4], 256
    $region45: #{tpu_custom_call.1} parent=1 // pred_fallthru
      _
    %474 = vsyncpa [#allocation3], 1
    %475 = vsyncpa [#allocation6], 1
    %476 = vsyncpa [#allocation4], 1

</llo_original>
